<compile_context>
chip_gen: v7x
topology: tpu7x:2x2x1
jax: 0.10.0
libtpu: 0.0.40
codegen_flags: <defaults>
</compile_context>

<pallas_src>
import functools

import jax
import jax.numpy as jnp
import numpy as np
from jax.experimental import pallas as pl
from jax.experimental.pallas import tpu as pltpu


# --------------------------- helpers -----------------------------------------

def _round_up(x, m):
    return ((x + m - 1) // m) * m


@functools.lru_cache(maxsize=1)
def _vmem_capacity_bytes():
    """Physical VMEM per core; conservative fallback if the query is unavailable."""
    try:
        return int(pltpu.get_tpu_info().vmem_capacity_bytes)
    except Exception:
        return 64 * 2**20


@functools.lru_cache(maxsize=1)
def _vmem_plan_caps():
    vmem = _vmem_capacity_bytes()
    small_vmem = vmem < 100 * 2**20          # v7x-like: 64 MiB / TC, 2 TCs
    # Scoped-VMEM budget for the kernel working set (leave headroom for Mosaic
    # internal scratch): ~52 MiB on 64-MiB parts, ~100 MiB on 128-MiB parts.
    cap = 52 * 2**20 if small_vmem else 100 * 2**20
    return small_vmem, cap


def _need_bytes(tm, tk, op, n_state):
    """Conservative VMEM working-set estimate (double-buffered BlockSpec buffers)."""
    return (2 * tm * tk * 2              # patches tile, bf16
            + 2 * tk * op * 2            # weight tile, bf16
            + 2 * op * 4                 # bias tile
            + n_state * 2 * tm * op * 4)  # f32 state tiles (mem-in / spike / mem-out or conv-out)


def _plan_weight(K, Op, n_state=3):
    """Decide K padding / K tiling.  Returns (Kp, tk, full_k)."""
    _, cap = _vmem_plan_caps()
    Kp = _round_up(K, 128)               # lane-dense contraction depth even for tiny K
    if _need_bytes(128, Kp, Op, n_state) <= cap // 2:
        return Kp, Kp, True              # weight fully VMEM-resident; no K grid axis
    tk = 512
    return _round_up(K, tk), tk, False


def _plan_m(M, tk, Op, n_state):
    """Choose the M tile and the scoped-VMEM limit for this geometry."""
    small_vmem, cap = _vmem_plan_caps()
    tm_cap = max(128, _round_up(M, 128))
    tm = 128
    for cand in (2048, 1024, 512, 256, 128):
        if cand > tm_cap or _need_bytes(cand, tk, Op, n_state) > cap:
            continue
        if small_vmem and cand > 128 and M > 128 and (M + cand - 1) // cand < 2:
            continue                     # keep >= 2 M blocks so both v7x TCs have work
        tm = cand
        break
    vmem_limit = int(min(cap, max(32 * 2**20,
                                  _need_bytes(tm, tk, Op, n_state) + 16 * 2**20)))
    return tm, vmem_limit


# --------------------------- Pallas kernels ----------------------------------

def _spike_fullk_kernel(scal_ref, patch_ref, w_ref, b_ref, mem_ref,
                        spike_ref, mem_out_ref):
    """use_spike=True, weight fully resident: conv (bf16 MXU, f32) + bias + IF neuron."""
    thr = scal_ref[0]                                   # threshold (SMEM scalar)
    x = jnp.dot(patch_ref[...], w_ref[...],
                preferred_element_type=jnp.float32) + b_ref[...]
    mem_new = mem_ref[...] + x
    spike = jnp.where(mem_new >= thr, thr, 0.0)         # (mem>=thr).float()*thr
    spike_ref[...] = spike
    mem_out_ref[...] = mem_new - spike


def _spike_tiled_kernel(scal_ref, patch_ref, w_ref, b_ref, mem_ref,
                        spike_ref, mem_out_ref):
    """use_spike=True, K-tiled fallback: accumulate into the resident f32 output block."""
    k = pl.program_id(1)

    @pl.when(k == 0)
    def _():
        spike_ref[...] = jnp.zeros_like(spike_ref)

    spike_ref[...] += jnp.dot(patch_ref[...], w_ref[...],
                              preferred_element_type=jnp.float32)

    @pl.when(k == pl.num_programs(1) - 1)
    def _():
        thr = scal_ref[0]
        x = spike_ref[...] + b_ref[...]                 # bias already includes shift
        mem_new = mem_ref[...] + x
        spike = jnp.where(mem_new >= thr, thr, 0.0)
        spike_ref[...] = spike
        mem_out_ref[...] = mem_new - spike


def _conv_fullk_kernel(patch_ref, w_ref, b_ref, out_ref):
    """use_spike=False, weight fully resident: conv + bias; StraightThrough == identity."""
    out_ref[...] = (jnp.dot(patch_ref[...], w_ref[...],
                            preferred_element_type=jnp.float32) + b_ref[...])


def _conv_tiled_kernel(patch_ref, w_ref, b_ref, out_ref):
    """use_spike=False, K-tiled fallback: accumulate into the resident f32 output block."""
    k = pl.program_id(1)

    @pl.when(k == 0)
    def _():
        out_ref[...] = jnp.zeros_like(out_ref)

    out_ref[...] += jnp.dot(patch_ref[...], w_ref[...],
                            preferred_element_type=jnp.float32)

    @pl.when(k == pl.num_programs(1) - 1)
    def _():
        out_ref[...] = out_ref[...] + b_ref[...]


# --------------------------- im2col (bf16, pre-padded) ------------------------

def _im2col_nchw(x_nchw, kh, kw, stride, pad, m_pad_to, k_pad_to):
    """x: [N,C,H,W] -> bf16 patches [Mp, Kp] (padded once), plus (N, Ho, Wo)."""
    x = jnp.transpose(x_nchw, (0, 2, 3, 1)).astype(jnp.bfloat16)     # NHWC, bf16
    if pad:
        x = jnp.pad(x, ((0, 0), (pad, pad), (pad, pad), (0, 0)))
    N, Hp, Wp, C = x.shape
    Ho = (Hp - kh) // stride + 1
    Wo = (Wp - kw) // stride + 1
    cols = []
    for i in range(kh):
        for j in range(kw):
            cols.append(x[:, i:i + (Ho - 1) * stride + 1:stride,
                            j:j + (Wo - 1) * stride + 1:stride, :])
    p = jnp.stack(cols, axis=3).reshape(N * Ho * Wo, kh * kw * C)
    M, K = p.shape
    Mp = _round_up(M, m_pad_to)
    if Mp != M or k_pad_to != K:
        p = jnp.pad(p, ((0, Mp - M), (0, k_pad_to - K)))
    return p, (N, Ho, Wo)


# --------------------------- jitted forward wrappers --------------------------

@functools.partial(jax.jit,
                   static_argnames=("kh", "kw", "stride", "pad", "cout",
                                    "tm", "tk", "full_k", "vmem_limit", "shift_scale"),
                   donate_argnums=(3,))
def _spike_forward(x_nchw, w2d, b2d, mem, thr, *,
                   kh, kw, stride, pad, cout, tm, tk, full_k, vmem_limit, shift_scale):
    Kp, Op = w2d.shape
    patches, (N, Ho, Wo) = _im2col_nchw(x_nchw, kh, kw, stride, pad, tm, Kp)
    Mp = patches.shape[0]
    b_eff = b2d + thr * jnp.float32(shift_scale)        # fold shift term into bias
    scal = jnp.asarray(thr, jnp.float32).reshape(1)

    if full_k:
        grid_spec = pltpu.PrefetchScalarGridSpec(
            num_scalar_prefetch=1,
            grid=(Mp // tm,),
            in_specs=[pl.BlockSpec((tm, Kp), lambda i, s: (i, 0)),
                      pl.BlockSpec((Kp, Op), lambda i, s: (0, 0)),
                      pl.BlockSpec((1, Op), lambda i, s: (0, 0)),
                      pl.BlockSpec((tm, Op), lambda i, s: (i, 0))],
            out_specs=(pl.BlockSpec((tm, Op), lambda i, s: (i, 0)),
                       pl.BlockSpec((tm, Op), lambda i, s: (i, 0))))
        kernel = _spike_fullk_kernel
        dims = ("parallel",)
    else:
        grid_spec = pltpu.PrefetchScalarGridSpec(
            num_scalar_prefetch=1,
            grid=(Mp // tm, Kp // tk),
            in_specs=[pl.BlockSpec((tm, tk), lambda i, k, s: (i, k)),
                      pl.BlockSpec((tk, Op), lambda i, k, s: (k, 0)),
                      pl.BlockSpec((1, Op), lambda i, k, s: (0, 0)),
                      pl.BlockSpec((tm, Op), lambda i, k, s: (i, 0))],
            out_specs=(pl.BlockSpec((tm, Op), lambda i, k, s: (i, 0)),
                       pl.BlockSpec((tm, Op), lambda i, k, s: (i, 0))))
        kernel = _spike_tiled_kernel
        dims = ("parallel", "arbitrary")

    spike_p, mem_out = pl.pallas_call(
        kernel,
        out_shape=(jax.ShapeDtypeStruct((Mp, Op), jnp.float32),
                   jax.ShapeDtypeStruct((Mp, Op), jnp.float32)),
        grid_spec=grid_spec,
        # Operand order of this pallas_call (includes the scalar-prefetch arg):
        #   0=scal, 1=patches, 2=w2d, 3=b_eff, 4=mem  ->  alias mem to output 1 (mem_out).
        input_output_aliases={4: 1},
        compiler_params=pltpu.CompilerParams(
            dimension_semantics=dims, vmem_limit_bytes=vmem_limit),
    )(scal, patches, w2d, b_eff, mem)

    M = N * Ho * Wo
    # TODO(synk): NCHW slice+transpose per timestep is an extra HBM pass; keeping the
    #             padded [Mp, Op] slab (or NHWC) between layers would remove it.
    spike = spike_p[:M, :cout].reshape(N, Ho, Wo, cout).transpose(0, 3, 1, 2)
    return spike, mem_out


@functools.partial(jax.jit,
                   static_argnames=("kh", "kw", "stride", "pad", "cout",
                                    "tm", "tk", "full_k", "vmem_limit"))
def _conv_forward(x_nchw, w2d, b2d, *, kh, kw, stride, pad, cout, tm, tk,
                  full_k, vmem_limit):
    Kp, Op = w2d.shape
    patches, (N, Ho, Wo) = _im2col_nchw(x_nchw, kh, kw, stride, pad, tm, Kp)
    Mp = patches.shape[0]

    if full_k:
        grid_spec = pltpu.PrefetchScalarGridSpec(
            num_scalar_prefetch=0,
            grid=(Mp // tm,),
            in_specs=[pl.BlockSpec((tm, Kp), lambda i: (i, 0)),
                      pl.BlockSpec((Kp, Op), lambda i: (0, 0)),
                      pl.BlockSpec((1, Op), lambda i: (0, 0))],
            out_specs=pl.BlockSpec((tm, Op), lambda i: (i, 0)))
        kernel = _conv_fullk_kernel
        dims = ("parallel",)
    else:
        grid_spec = pltpu.PrefetchScalarGridSpec(
            num_scalar_prefetch=0,
            grid=(Mp // tm, Kp // tk),
            in_specs=[pl.BlockSpec((tm, tk), lambda i, k: (i, k)),
                      pl.BlockSpec((tk, Op), lambda i, k: (k, 0)),
                      pl.BlockSpec((1, Op), lambda i, k: (0, 0))],
            out_specs=pl.BlockSpec((tm, Op), lambda i, k: (i, 0)))
        kernel = _conv_tiled_kernel
        dims = ("parallel", "arbitrary")

    out_p = pl.pallas_call(
        kernel,
        out_shape=jax.ShapeDtypeStruct((Mp, Op), jnp.float32),
        grid_spec=grid_spec,
        compiler_params=pltpu.CompilerParams(
            dimension_semantics=dims, vmem_limit_bytes=vmem_limit),
    )(patches, w2d, b2d)

    M = N * Ho * Wo
    return out_p[:M, :cout].reshape(N, Ho, Wo, cout).transpose(0, 3, 1, 2)


# --------------------------- module wrapper -----------------------------------

class SpikeModulePallas:
    """JAX/Pallas counterpart of SpikeModule wrapping an nn.Conv2d."""

    def __init__(self, sim_length, weight_oihw, bias, stride=1, padding=1,
                 enable_shift=True):
        self.sim_length = sim_length
        self.enable_shift = enable_shift
        self.stride = stride
        self.padding = padding
        O, C, kh, kw = weight_oihw.shape
        self.kh, self.kw, self.cout = kh, kw, O

        K = kh * kw * C
        self.Op = _round_up(O, 128)                      # lane-dense output columns
        self.Kp, self.tk, self.full_k = _plan_weight(K, self.Op, n_state=3)

        # [O,C,kh,kw] -> [kh,kw,C,O] -> [K, O], zero-padded to [Kp, Op], bf16 for MXU.
        w2d = jnp.transpose(jnp.asarray(weight_oihw, jnp.float32),
                            (2, 3, 1, 0)).reshape(K, O)
        w2d = jnp.pad(w2d, ((0, self.Kp - K), (0, self.Op - O)))
        self.w2d = w2d.astype(jnp.bfloat16)
        self.org_w2d = self.w2d                          # org_weight copy (== quantized here)

        b = jnp.zeros((O,), jnp.float32) if bias is None else jnp.asarray(bias, jnp.float32)
        b = jnp.pad(b, (0, self.Op - O)).reshape(1, self.Op)
        self.b2d = b
        self.org_b2d = b

        self.threshold = None
        self.mem_pot = 0                                 # int 0 until spikes flow (like PyTorch)
        self.mem_pot_init = 0
        self.use_spike = False
        self.cur_t = 0

    def init_membrane_potential(self):
        self.mem_pot = self.mem_pot_init
        self.cur_t = 0

    def _geometry(self, x_nchw):
        N, _, H, W = x_nchw.shape
        Ho = (H + 2 * self.padding - self.kh) // self.stride + 1
        Wo = (W + 2 * self.padding - self.kw) // self.stride + 1
        return N * Ho * Wo

    def forward(self, x_nchw):
        M = self._geometry(x_nchw)
        common = dict(kh=self.kh, kw=self.kw, stride=self.stride, pad=self.padding,
                      cout=self.cout, tk=self.tk, full_k=self.full_k)
        if self.use_spike:
            if self.threshold is None:
                raise ValueError("use_spike=True requires a calibrated threshold")
            self.cur_t += 1
            tm, vmem_limit = _plan_m(M, self.tk, self.Op, n_state=3)
            Mp = _round_up(M, tm)
            if isinstance(self.mem_pot, (int, float)) and self.mem_pot == 0:
                mem = jnp.zeros((Mp, self.Op), jnp.float32)
            elif isinstance(self.mem_pot, jnp.ndarray) and self.mem_pot.shape == (Mp, self.Op):
                mem = self.mem_pot
            else:
                raise ValueError(
                    "membrane-potential geometry changed mid-simulation; call "
                    "init_membrane_potential() before changing the input shape")
            thr = jnp.asarray(self.threshold, jnp.float32)
            shift_scale = float(0.5 / self.sim_length) if self.enable_shift else 0.0
            spike, mem_out = _spike_forward(x_nchw, self.w2d, self.b2d, mem, thr,
                                            tm=tm, vmem_limit=vmem_limit,
                                            shift_scale=shift_scale, **common)
            self.mem_pot = mem_out                       # stays in padded [Mp, Op] layout
            return spike
        else:
            tm, vmem_limit = _plan_m(M, self.tk, self.Op, n_state=1)
            return _conv_forward(x_nchw, self.org_w2d, self.org_b2d,
                                 tm=tm, vmem_limit=vmem_limit, **common)


# --------------------------- demo / check ------------------------------------

if __name__ == "__main__":
    key = jax.random.PRNGKey(0)
    kx, kw_, kb = jax.random.split(key, 3)

    N, Cin, H, W = 2, 4, 16, 16
    Cout, KH, KW = 8, 3, 3
    T = 8

    x = jax.random.normal(kx, (N, Cin, H, W), jnp.float32)
    weight = jax.random.normal(kw_, (Cout, Cin, KH, KW), jnp.float32) * 0.1
    bias = jax.random.normal(kb, (Cout,), jnp.float32) * 0.1

    mod = SpikeModulePallas(sim_length=T, weight_oihw=weight, bias=bias,
                            stride=1, padding=1, enable_shift=True)

    # ---- non-spike (ANN) path: compare vs XLA conv with the same bf16 inputs ----
    y_ann = jax.block_until_ready(mod.forward(x))
    conv_ref = jax.lax.conv_general_dilated(
        x.astype(jnp.bfloat16), weight.astype(jnp.bfloat16),
        window_strides=(1, 1), padding=((1, 1), (1, 1)),
        dimension_numbers=("NCHW", "OIHW", "NCHW"),
        preferred_element_type=jnp.float32) + bias[None, :, None, None]
    np.testing.assert_allclose(np.asarray(y_ann), np.asarray(conv_ref),
                               rtol=1e-4, atol=1e-4)

    # ---- spike (IF neuron) path over a few timesteps ---------------------------
    mod.use_spike = True
    mod.threshold = 1.0
    mod.init_membrane_potential()

    thr = 1.0
    shift = thr * 0.5 / T
    # Linear response (conv + shifted bias) computed via the SAME Pallas matmul
    # path, so the pure-JAX IF reference below matches the fused kernel exactly.
    mod_lin = SpikeModulePallas(sim_length=T, weight_oihw=weight,
                                bias=bias + shift, stride=1, padding=1)
    x_eff = jax.block_until_ready(mod_lin.forward(x))

    mem_ref = jnp.zeros_like(x_eff)
    for _ in range(3):
        spike = jax.block_until_ready(mod.forward(x))
        mem_ref = mem_ref + x_eff
        spike_ref = (mem_ref >= thr).astype(jnp.float32) * thr
        mem_ref = mem_ref - spike_ref
        np.testing.assert_allclose(np.asarray(spike), np.asarray(spike_ref),
                                   rtol=0.0, atol=1e-5)

    print("KERNEL_OK")
</pallas_src>

<mosaic_0001>
module attributes {stable_mosaic.version = 11 : i64} {
  func.func @_conv_fullk_kernel(%arg0: i32, %arg1: memref<256x128xbf16, #tpu.memory_space<vmem>>, %arg2: memref<128x128xbf16, #tpu.memory_space<vmem>>, %arg3: memref<1x128xf32, #tpu.memory_space<vmem>>, %arg4: memref<256x128xf32, #tpu.memory_space<vmem>>) attributes {dimension_semantics = [#tpu.dimension_semantics<parallel>], iteration_bounds = array<i64: 2>, scalar_prefetch = 0 : i64, scratch_operands = 0 : i64, tpu.core_type = #tpu.core_type<tc>, window_params = [{transform_indices = @transform_0, window_bounds = array<i64: 256, 128>}, {pipeline_mode = #tpu.pipeline_mode<synchronous>, transform_indices = @transform_1, window_bounds = array<i64: 128, 128>}, {pipeline_mode = #tpu.pipeline_mode<synchronous>, transform_indices = @transform_2, window_bounds = array<i64: 1, 128>}, {transform_indices = @transform_3, window_bounds = array<i64: 256, 128>}]} {
    %c0 = arith.constant 0 : index
    %c0_0 = arith.constant 0 : index
    %0 = vector.load %arg1[%c0, %c0_0] : memref<256x128xbf16, #tpu.memory_space<vmem>>, vector<256x128xbf16>
    %c0_1 = arith.constant 0 : index
    %c0_2 = arith.constant 0 : index
    %1 = vector.load %arg2[%c0_1, %c0_2] : memref<128x128xbf16, #tpu.memory_space<vmem>>, vector<128x128xbf16>
    %cst = arith.constant dense<0.000000e+00> : vector<256x128xf32>
    %2 = tpu.matmul %0, %1, %cst {dimension_numbers = #tpu.dot_dimension_numbers<[1], [0], [0], [1], [0, 0, 1, 1], [], []>} : vector<256x128xbf16>, vector<128x128xbf16>, vector<256x128xf32> -> vector<256x128xf32>
    %c0_3 = arith.constant 0 : index
    %c0_4 = arith.constant 0 : index
    %3 = vector.load %arg3[%c0_3, %c0_4] : memref<1x128xf32, #tpu.memory_space<vmem>>, vector<1x128xf32>
    %4 = vector.broadcast %3 : vector<1x128xf32> to vector<256x128xf32>
    %5 = arith.addf %2, %4 : vector<256x128xf32>
    %c0_5 = arith.constant 0 : index
    %c0_6 = arith.constant 0 : index
    %6 = vector.load %arg4[%c0_5, %c0_6] : memref<256x128xf32, #tpu.memory_space<vmem>>, vector<256x128xf32>
    tpu.vector_store %arg4[%c0_5, %c0_6], %5 {strides = array<i32>} : memref<256x128xf32, #tpu.memory_space<vmem>>, vector<256x128xf32>,
    return
  }
  func.func @transform_0(%arg0: i32) -> (i32, i32) {
    %c0_i32 = arith.constant 0 : i32
    %c0_i32_0 = arith.constant 0 : i32
    return %arg0, %c0_i32 : i32, i32
  }
  func.func @transform_1(%arg0: i32) -> (i32, i32) {
    %c0_i32 = arith.constant 0 : i32
    %c0_i32_0 = arith.constant 0 : i32
    %c0_i32_1 = arith.constant 0 : i32
    return %c0_i32, %c0_i32_0 : i32, i32
  }
  func.func @transform_2(%arg0: i32) -> (i32, i32) {
    %c0_i32 = arith.constant 0 : i32
    %c0_i32_0 = arith.constant 0 : i32
    %c0_i32_1 = arith.constant 0 : i32
    return %c0_i32, %c0_i32_0 : i32, i32
  }
  func.func @transform_3(%arg0: i32) -> (i32, i32) {
    %c0_i32 = arith.constant 0 : i32
    %c0_i32_0 = arith.constant 0 : i32
    return %arg0, %c0_i32 : i32, i32
  }
}

</mosaic_0001>

<llo_original>
// kernel: _conv_forward.1
$region0: #{_conv_forward.1}
  #allocation0 [shape = 'u32[]', space=smem, size = 0x4, offset = 0x4, fixed_abs, tag = 'smem constant byte address 0x4 - core index']
  #allocation1 [shape = 'u32[144,128]{1,0:T(1,128)}', space=vmem, size = 0x12000, scoped, tag = 'internal scratch']
  %s0 = inlined_call_operand.vmem [shape: bf16[512,128], index: 0, kind: input, shape index: {}]
  %s1 = inlined_call_operand.vmem [shape: bf16[128,128], index: 1, kind: input, shape index: {}]
  %s2 = inlined_call_operand.vmem [shape: f32[1,128], index: 2, kind: input, shape index: {}]
  %s3 = inlined_call_operand.vmem [shape: f32[512,128], index: 3, kind: output, shape index: {}]
  %s4 = sld [smem:[#allocation0]]
  $region45: #{_conv_forward.1} parent=0
    _
  %s6 = ssub.s32 1, %s4
  %s7 = scalar_select 0, %s6, %s4
  loop: start=0, step=1, limit=4
  $region2: #{_conv_forward.1} parent=0 // loop_pre_header
    _
  $region3: #{_conv_forward.1} parent=0 // loop_header
    %s9 = sphi 0, %s13
    %p10 = scmp.ge.s32.totalorder %s9, 4
    %s19 = sphi 0, %s21
    %s22 = sphi 0, %s19
    %s23 = sphi 0, %s22
    %s39 = sphi 0, %s23
    %s43 = sphi 0, %s43
    %s45 = sphi 0, %s43
    %s46 = sphi 0, %s45
    %s60 = sphi 0, %s46
    %s64 = sphi 0, %s64
    %s66 = sphi 0, %s64
    %s67 = sphi 0, %s66
    %s81 = sphi 0, %s67
    %s87 = sphi 0, %s89
    %s90 = sphi 0, %s87
    %s91 = sphi 0, %s90
    %s107 = sphi 0, %s91
  $region4: #{_conv_forward.1} parent=0 // loop_header_branch
    %12 = sbr.rel (%p10) target = $region8
  $region5: #{_conv_forward.1} parent=0 // loop_body
    %s14 = ssub.s32 %s9, 1
    %s15 = ssub.s32 %s9, 2
    %s16 = sadd.s32 %s9, 1
    %s17 = ssub.s32 %s9, %s16
    %p18 = scmp.eq.s32.totalorder %s17, 0
    %s20 = sadd.s32 %s19, 1
    %s21 = scalar_select %p18, %s19, %s20
    %p24 = pneg %p18
    %p25 = scmp.eq.s32.totalorder %s9, 1
    %p26 = por %p24, %p25
    %p27 = scmp.ne.s32.totalorder %s19, %s22
    %p28 = scmp.eq.s32.totalorder %s9, 0
    %p29 = por %p27, %p28
    %p30 = scmp.ne.s32.totalorder %s19, %s22
    %p31 = scmp.eq.s32.totalorder %s14, 1
    %p32 = por %p30, %p31
    %p33 = scmp.ne.s32.totalorder %s22, %s23
    %p34 = scmp.eq.s32.totalorder %s14, 0
    %p35 = por %p33, %p34
    %p36 = scmp.ne.s32.totalorder %s22, %s23
    %p37 = scmp.eq.s32.totalorder %s15, 1
    %p38 = por %p36, %p37
    %p40 = scmp.ne.s32.totalorder %s23, %s39
    %p41 = scmp.eq.s32.totalorder %s15, 0
    %p42 = por %p40, %p41
    %s44 = sadd.s32 %s43, 1
    %p47 = scmp.eq.s32.totalorder %s9, 1
    %p48 = scmp.ne.s32.totalorder %s43, %s45
    %p49 = scmp.eq.s32.totalorder %s9, 0
    %p50 = por %p48, %p49
    %p51 = scmp.ne.s32.totalorder %s43, %s45
    %p52 = scmp.eq.s32.totalorder %s14, 1
    %p53 = por %p51, %p52
    %p54 = scmp.ne.s32.totalorder %s45, %s46
    %p55 = scmp.eq.s32.totalorder %s14, 0
    %p56 = por %p54, %p55
    %p57 = scmp.ne.s32.totalorder %s45, %s46
    %p58 = scmp.eq.s32.totalorder %s15, 1
    %p59 = por %p57, %p58
    %p61 = scmp.ne.s32.totalorder %s46, %s60
    %p62 = scmp.eq.s32.totalorder %s15, 0
    %p63 = por %p61, %p62
    %s65 = sadd.s32 %s64, 1
    %p68 = scmp.eq.s32.totalorder %s9, 1
    %p69 = scmp.ne.s32.totalorder %s64, %s66
    %p70 = scmp.eq.s32.totalorder %s9, 0
    %p71 = por %p69, %p70
    %p72 = scmp.ne.s32.totalorder %s64, %s66
    %p73 = scmp.eq.s32.totalorder %s14, 1
    %p74 = por %p72, %p73
    %p75 = scmp.ne.s32.totalorder %s66, %s67
    %p76 = scmp.eq.s32.totalorder %s14, 0
    %p77 = por %p75, %p76
    %p78 = scmp.ne.s32.totalorder %s66, %s67
    %p79 = scmp.eq.s32.totalorder %s15, 1
    %p80 = por %p78, %p79
    %p82 = scmp.ne.s32.totalorder %s67, %s81
    %p83 = scmp.eq.s32.totalorder %s15, 0
    %p84 = por %p82, %p83
    %s85 = ssub.s32 %s9, %s16
    %p86 = scmp.eq.s32.totalorder %s85, 0
    %s88 = sadd.s32 %s87, 1
    %s89 = scalar_select %p86, %s87, %s88
    %p92 = pneg %p86
    %p93 = scmp.eq.s32.totalorder %s9, 1
    %p94 = por %p92, %p93
    %p95 = scmp.ne.s32.totalorder %s87, %s90
    %p96 = scmp.eq.s32.totalorder %s9, 0
    %p97 = por %p95, %p96
    %p98 = scmp.ne.s32.totalorder %s87, %s90
    %p99 = scmp.eq.s32.totalorder %s14, 1
    %p100 = por %p98, %p99
    %p101 = scmp.ne.s32.totalorder %s90, %s91
    %p102 = scmp.eq.s32.totalorder %s14, 0
    %p103 = por %p101, %p102
    %p104 = scmp.ne.s32.totalorder %s90, %s91
    %p105 = scmp.eq.s32.totalorder %s15, 1
    %p106 = por %p104, %p105
    %p108 = scmp.ne.s32.totalorder %s91, %s107
    %p109 = scmp.eq.s32.totalorder %s15, 0
    %p110 = por %p108, %p109
    %p111 = scmp.le.s32.totalorder 1, %s9
    %p112 = scmp.lt.s32.totalorder %s9, 3
    %p113 = pnand %p111, %p112
    %p114 = pneg %p113
    // Predicated region
    $region9: #{_conv_forward.1} parent=5 // pred_check
      _
    $region10: #{_conv_forward.1} parent=5 // pred_check_branch
      %116 = sbr.rel (%p113) target = $region12
    $region11: #{_conv_forward.1} parent=5 // pred_region
      %s117 = ssub.s32 %s9, 1
      // Predicated region
      $region13: #{_conv_forward.1} parent=11 // pred_check
        %p118 = pneg %p56
      $region14: #{_conv_forward.1} parent=11 // pred_check_branch
        %120 = sbr.rel (%p118) target = $region16
      $region15: #{_conv_forward.1} parent=11 // pred_region
        _
      $region16: #{_conv_forward.1} parent=11 // pred_fallthru
        _
      // Predicated region
      $region17: #{_conv_forward.1} parent=11 // pred_check
        %p121 = pneg %p77
      $region18: #{_conv_forward.1} parent=11 // pred_check_branch
        %123 = sbr.rel (%p121) target = $region20
      $region19: #{_conv_forward.1} parent=11 // pred_region
        _
      $region20: #{_conv_forward.1} parent=11 // pred_fallthru
        _
    $region12: #{_conv_forward.1} parent=5 // pred_fallthru
      _
    %p124 = scmp.lt.s32.totalorder %s9, 2
    // Predicated region
    $region21: #{_conv_forward.1} parent=5 // pred_check
      %p125 = pneg %p124
    $region22: #{_conv_forward.1} parent=5 // pred_check_branch
      %127 = sbr.rel (%p125) target = $region24
    $region23: #{_conv_forward.1} parent=5 // pred_region
      // Predicated region
      $region25: #{_conv_forward.1} parent=23 // pred_check
        %p128 = pneg %p29
      $region26: #{_conv_forward.1} parent=23 // pred_check_branch
        %130 = sbr.rel (%p128) target = $region28
      $region27: #{_conv_forward.1} parent=23 // pred_region
        %s131 = smul.u32 32, %s9
        %p132 = scmp.lt.s32.totalorder %s131, 63
        %s133 = scalar_select %p132, %s131, 63
        %s134 = smul.addr %s133, 4
        %s135 = scalar_lea.vmem %s0, %s134
        %s136 = smul.u32 32, %s9
      $region28: #{_conv_forward.1} parent=23 // pred_fallthru
        _
    $region24: #{_conv_forward.1} parent=5 // pred_fallthru
      _
    %p137 = scmp.le.s32.totalorder 1, %s9
    %p138 = scmp.lt.s32.totalorder %s9, 3
    %p139 = pnand %p137, %p138
    %p140 = pneg %p139
    // Predicated region
    $region29: #{_conv_forward.1} parent=5 // pred_check
      _
    $region30: #{_conv_forward.1} parent=5 // pred_check_branch
      %142 = sbr.rel (%p139) target = $region32
    $region31: #{_conv_forward.1} parent=5 // pred_region
      %s143 = ssub.s32 %s9, 1
      %s144 = smul.u32 32, %s14
      %p145 = scmp.lt.s32.totalorder %s144, 63
      %s146 = scalar_select %p145, %s144, 63
      %s147 = smul.addr %s146, 4
      %s148 = scalar_lea.vmem %s0, %s147
      %p149 = pneg %p35
      %p150 = pneg %p32
      %p151 = pneg %p56
      %p152 = pneg %p53
      %p153 = pneg %p77
      %p154 = pneg %p74
      %p155 = pneg %p103
      %p156 = pneg %p100
      %s157 = smul.u32 32, %s14
      %p158 = scmp.lt.s32.totalorder %s157, 63
      %s159 = scalar_select %p158, %s157, 63
      %s160 = smul.addr %s159, 8
      %s161 = scalar_lea.vmem %s3, %s160
      %s162 = smul.u32 32, %s14
      %p163 = scmp.lt.s32.totalorder %s162, 63
      %s164 = scalar_select %p163, %s162, 63
      %s165 = smul.addr %s164, 4
      %s166 = scalar_lea.vmem %s0, %s165
      %s167 = smul.u32 32, %s14
      %s168 = smul.u32 32, %s14
      %p169 = scmp.lt.s32.totalorder %s168, 63
      %s170 = scalar_select %p169, %s168, 63
      %s171 = smul.addr %s170, 8
      %s172 = scalar_lea.vmem %s3, %s171
      %s173 = smul.u32 32, %s14
      %v175 = vld [vmem:[%s166] sm:$0xf]
      %v176 = vld [vmem:[%s166 + $0x4] sm:$0xf]
      %v177 = vld [vmem:[%s166 + $0x8] sm:$0xf]
      %v178 = vld [vmem:[%s166 + $0xc] sm:$0xf]
      %v179 = vld [vmem:[%s166 + $0x10] sm:$0xf]
      %v180 = vld [vmem:[%s166 + $0x14] sm:$0xf]
      %v181 = vld [vmem:[%s166 + $0x18] sm:$0xf]
      %v182 = vld [vmem:[%s166 + $0x1c] sm:$0xf]
      %v183 = vld [vmem:[%s166 + $0x20] sm:$0xf]
      %v184 = vld [vmem:[%s166 + $0x24] sm:$0xf]
      %v185 = vld [vmem:[%s166 + $0x28] sm:$0xf]
      %v186 = vld [vmem:[%s166 + $0x2c] sm:$0xf]
      %v187 = vld [vmem:[%s166 + $0x30] sm:$0xf]
      %v188 = vld [vmem:[%s166 + $0x34] sm:$0xf]
      %v189 = vld [vmem:[%s166 + $0x38] sm:$0xf]
      %v190 = vld [vmem:[%s166 + $0x3c] sm:$0xf]
      %v191 = vld [vmem:[%s166 + $0x40] sm:$0xf]
      %v192 = vld [vmem:[%s166 + $0x44] sm:$0xf]
      %v193 = vld [vmem:[%s166 + $0x48] sm:$0xf]
      %v194 = vld [vmem:[%s166 + $0x4c] sm:$0xf]
      %v195 = vld [vmem:[%s166 + $0x50] sm:$0xf]
      %v196 = vld [vmem:[%s166 + $0x54] sm:$0xf]
      %v197 = vld [vmem:[%s166 + $0x58] sm:$0xf]
      %v198 = vld [vmem:[%s166 + $0x5c] sm:$0xf]
      %v199 = vld [vmem:[%s166 + $0x60] sm:$0xf]
      %v200 = vld [vmem:[%s166 + $0x64] sm:$0xf]
      %v201 = vld [vmem:[%s166 + $0x68] sm:$0xf]
      %v202 = vld [vmem:[%s166 + $0x6c] sm:$0xf]
      %v203 = vld [vmem:[%s166 + $0x70] sm:$0xf]
      %v204 = vld [vmem:[%s166 + $0x74] sm:$0xf]
      %v205 = vld [vmem:[%s166 + $0x78] sm:$0xf]
      %v206 = vld [vmem:[%s166 + $0x7c] sm:$0xf]
      %v207 = vld [vmem:[%s1] sm:$0xf]
      %v208 = vld [vmem:[%s1 + $0x4] sm:$0xf]
      %v209 = vld [vmem:[%s1 + $0x8] sm:$0xf]
      %v210 = vld [vmem:[%s1 + $0xc] sm:$0xf]
      %v211 = vld [vmem:[%s1 + $0x10] sm:$0xf]
      %v212 = vld [vmem:[%s1 + $0x14] sm:$0xf]
      %v213 = vld [vmem:[%s1 + $0x18] sm:$0xf]
      %v214 = vld [vmem:[%s1 + $0x1c] sm:$0xf]
      %v215 = vld [vmem:[%s1 + $0x20] sm:$0xf]
      %v216 = vld [vmem:[%s1 + $0x24] sm:$0xf]
      %v217 = vld [vmem:[%s1 + $0x28] sm:$0xf]
      %v218 = vld [vmem:[%s1 + $0x2c] sm:$0xf]
      %v219 = vld [vmem:[%s1 + $0x30] sm:$0xf]
      %v220 = vld [vmem:[%s1 + $0x34] sm:$0xf]
      %v221 = vld [vmem:[%s1 + $0x38] sm:$0xf]
      %v222 = vld [vmem:[%s1 + $0x3c] sm:$0xf]
      %v223 = vld [vmem:[%s2] sm:$0x1]
      %v225 = vlaneseq
      %v226 = vshrl.u32 %v225, 7
      %v227 = vsub.s32 0, %v226
      %v228 = vrot.slane %v223, %v227
      %v262 = vunpack.c.l.b16 %v175
      %v263 = vunpack.c.l.b16 %v176
      %v264 = vunpack.c.l.b16 %v177
      %v265 = vunpack.c.l.b16 %v178
      %v266 = vunpack.c.l.b16 %v179
      %v267 = vunpack.c.l.b16 %v180
      %v268 = vunpack.c.l.b16 %v181
      %v269 = vunpack.c.l.b16 %v182
      %v270 = vunpack.c.l.b16 %v183
      %v271 = vunpack.c.l.b16 %v184
      %v272 = vunpack.c.l.b16 %v185
      %v273 = vunpack.c.l.b16 %v186
      %v274 = vunpack.c.l.b16 %v187
      %v275 = vunpack.c.l.b16 %v188
      %v276 = vunpack.c.l.b16 %v189
      %v277 = vunpack.c.l.b16 %v190
      %v278 = vunpack.c.l.b16 %v191
      %v279 = vunpack.c.l.b16 %v192
      %v280 = vunpack.c.l.b16 %v193
      %v281 = vunpack.c.l.b16 %v194
      %v282 = vunpack.c.l.b16 %v195
      %v283 = vunpack.c.l.b16 %v196
      %v284 = vunpack.c.l.b16 %v197
      %v285 = vunpack.c.l.b16 %v198
      %v286 = vunpack.c.l.b16 %v199
      %v287 = vunpack.c.l.b16 %v200
      %v288 = vunpack.c.l.b16 %v201
      %v289 = vunpack.c.l.b16 %v202
      %v290 = vunpack.c.l.b16 %v203
      %v291 = vunpack.c.l.b16 %v204
      %v292 = vunpack.c.l.b16 %v205
      %v293 = vunpack.c.l.b16 %v206
      %v294 = vpack.c.b16 %v263, %v262
      %v295 = vpack.c.b16 %v265, %v264
      %v296 = vpack.c.b16 %v267, %v266
      %v297 = vpack.c.b16 %v269, %v268
      %v298 = vpack.c.b16 %v271, %v270
      %v299 = vpack.c.b16 %v273, %v272
      %v300 = vpack.c.b16 %v275, %v274
      %v301 = vpack.c.b16 %v277, %v276
      %v302 = vpack.c.b16 %v279, %v278
      %v303 = vpack.c.b16 %v281, %v280
      %v304 = vpack.c.b16 %v283, %v282
      %v305 = vpack.c.b16 %v285, %v284
      %v306 = vpack.c.b16 %v287, %v286
      %v307 = vpack.c.b16 %v289, %v288
      %v308 = vpack.c.b16 %v291, %v290
      %v309 = vpack.c.b16 %v293, %v292
      %v342 = vunpack.c.l.b16 %v207
      %v343 = vunpack.c.l.b16 %v208
      %v344 = vunpack.c.l.b16 %v209
      %v345 = vunpack.c.l.b16 %v210
      %v346 = vunpack.c.l.b16 %v211
      %v347 = vunpack.c.l.b16 %v212
      %v348 = vunpack.c.l.b16 %v213
      %v349 = vunpack.c.l.b16 %v214
      %v350 = vunpack.c.l.b16 %v215
      %v351 = vunpack.c.l.b16 %v216
      %v352 = vunpack.c.l.b16 %v217
      %v353 = vunpack.c.l.b16 %v218
      %v354 = vunpack.c.l.b16 %v219
      %v355 = vunpack.c.l.b16 %v220
      %v356 = vunpack.c.l.b16 %v221
      %v357 = vunpack.c.l.b16 %v222
      %v358 = vpack.c.b16 %v343, %v342
      %v359 = vpack.c.b16 %v345, %v344
      %v360 = vpack.c.b16 %v347, %v346
      %v361 = vpack.c.b16 %v349, %v348
      %v362 = vpack.c.b16 %v351, %v350
      %v363 = vpack.c.b16 %v353, %v352
      %v364 = vpack.c.b16 %v355, %v354
      %v365 = vpack.c.b16 %v357, %v356
      %374 = vmatprep.subr.bf16.mxu0 0
      %375 = vmatpush1.bf16.msra.mxu0 %v358
      %376 = vmatprep.subr.bf16.mxu0 0
      %377 = vmatpush1.bf16.msra.mxu0 %v359
      %378 = vmatprep.subr.bf16.mxu0 0
      %379 = vmatpush1.bf16.msra.mxu0 %v360
      %380 = vmatprep.subr.bf16.mxu0 0
      %381 = vmatpush1.bf16.msra.mxu0 %v361
      %382 = vmatprep.subr.bf16.mxu0 0
      %383 = vmatpush1.bf16.msra.mxu0 %v362
      %384 = vmatprep.subr.bf16.mxu0 0
      %385 = vmatpush1.bf16.msra.mxu0 %v363
      %386 = vmatprep.subr.bf16.mxu0 0
      %387 = vmatpush1.bf16.msra.mxu0 %v364
      %388 = vmatprep.subr.bf16.mxu0 0
      %389 = vmatpush1.bf16.msra.mxu0 %v365
      %390 = vmatprep.subr.bf16.mxu0 0
      %391 = vmatpush1.bf16.msra.mxu0 0
      %392 = vmatprep.subr.bf16.mxu0 0
      %393 = vmatpush1.bf16.msra.mxu0 0
      %394 = vmatprep.subr.bf16.mxu0 0
      %395 = vmatpush1.bf16.msra.mxu0 0
      %396 = vmatprep.subr.bf16.mxu0 0
      %397 = vmatpush1.bf16.msra.mxu0 0
      %398 = vmatprep.subr.bf16.mxu0 0
      %399 = vmatpush1.bf16.msra.mxu0 0
      %400 = vmatprep.subr.bf16.mxu0 0
      %401 = vmatpush1.bf16.msra.mxu0 0
      %402 = vmatprep.subr.bf16.mxu0 0
      %403 = vmatpush1.bf16.msra.mxu0 0
      %404 = vmatprep.subr.bf16.mxu0 0
      %405 = vmatpush1.bf16.msra.mxu0 0
      %406 = vmatprep.mubr.bf16.mxu0 0
      %407 = vmatmul.mubr.bf16.gmra.mrb[0].mxu0 %v294
      %v408 = vpop.f32.mrb[0].mxu0
      %v409 = vadd.f32 %v228, %v408
      %v410 = vpop.f32.mrb[0].mxu0
      %v411 = vpop.f32.mrb[0].mxu0
      %v412 = vadd.f32 %v228, %v411
      %v413 = vpop.f32.mrb[0].mxu0
      %414 = vmatprep.mubr.bf16.mxu0 0
      %415 = vmatmul.mubr.bf16.gmra.mrb[0].mxu0 %v295
      %v416 = vpop.f32.mrb[0].mxu0
      %v417 = vadd.f32 %v228, %v416
      %v418 = vpop.f32.mrb[0].mxu0
      %v419 = vpop.f32.mrb[0].mxu0
      %v420 = vadd.f32 %v228, %v419
      %v421 = vpop.f32.mrb[0].mxu0
      %422 = vmatprep.mubr.bf16.mxu0 0
      %423 = vmatmul.mubr.bf16.gmra.mrb[0].mxu0 %v296
      %v424 = vpop.f32.mrb[0].mxu0
      %v425 = vadd.f32 %v228, %v424
      %v426 = vpop.f32.mrb[0].mxu0
      %v427 = vpop.f32.mrb[0].mxu0
      %v428 = vadd.f32 %v228, %v427
      %v429 = vpop.f32.mrb[0].mxu0
      %430 = vmatprep.mubr.bf16.mxu0 0
      %431 = vmatmul.mubr.bf16.gmra.mrb[0].mxu0 %v297
      %v432 = vpop.f32.mrb[0].mxu0
      %v433 = vadd.f32 %v228, %v432
      %v434 = vpop.f32.mrb[0].mxu0
      %v435 = vpop.f32.mrb[0].mxu0
      %v436 = vadd.f32 %v228, %v435
      %v437 = vpop.f32.mrb[0].mxu0
      %438 = vmatprep.mubr.bf16.mxu0 0
      %439 = vmatmul.mubr.bf16.gmra.mrb[0].mxu0 %v298
      %v440 = vpop.f32.mrb[0].mxu0
      %v441 = vadd.f32 %v228, %v440
      %v442 = vpop.f32.mrb[0].mxu0
      %v443 = vpop.f32.mrb[0].mxu0
      %v444 = vadd.f32 %v228, %v443
      %v445 = vpop.f32.mrb[0].mxu0
      %446 = vmatprep.mubr.bf16.mxu0 0
      %447 = vmatmul.mubr.bf16.gmra.mrb[0].mxu0 %v299
      %v448 = vpop.f32.mrb[0].mxu0
      %v449 = vadd.f32 %v228, %v448
      %v450 = vpop.f32.mrb[0].mxu0
      %v451 = vpop.f32.mrb[0].mxu0
      %v452 = vadd.f32 %v228, %v451
      %v453 = vpop.f32.mrb[0].mxu0
      %454 = vmatprep.mubr.bf16.mxu0 0
      %455 = vmatmul.mubr.bf16.gmra.mrb[0].mxu0 %v300
      %v456 = vpop.f32.mrb[0].mxu0
      %v457 = vadd.f32 %v228, %v456
      %v458 = vpop.f32.mrb[0].mxu0
      %v459 = vpop.f32.mrb[0].mxu0
      %v460 = vadd.f32 %v228, %v459
      %v461 = vpop.f32.mrb[0].mxu0
      %462 = vmatprep.mubr.bf16.mxu0 0
      %463 = vmatmul.mubr.bf16.gmra.mrb[0].mxu0 %v301
      %v464 = vpop.f32.mrb[0].mxu0
      %v465 = vadd.f32 %v228, %v464
      %v466 = vpop.f32.mrb[0].mxu0
      %v467 = vpop.f32.mrb[0].mxu0
      %v468 = vadd.f32 %v228, %v467
      %v469 = vpop.f32.mrb[0].mxu0
      %470 = vmatprep.mubr.bf16.mxu0 0
      %471 = vmatmul.mubr.bf16.gmra.mrb[0].mxu0 %v302
      %v472 = vpop.f32.mrb[0].mxu0
      %v473 = vadd.f32 %v228, %v472
      %v474 = vpop.f32.mrb[0].mxu0
      %v475 = vpop.f32.mrb[0].mxu0
      %v476 = vadd.f32 %v228, %v475
      %v477 = vpop.f32.mrb[0].mxu0
      %478 = vmatprep.mubr.bf16.mxu0 0
      %479 = vmatmul.mubr.bf16.gmra.mrb[0].mxu0 %v303
      %v480 = vpop.f32.mrb[0].mxu0
      %v481 = vadd.f32 %v228, %v480
      %v482 = vpop.f32.mrb[0].mxu0
      %v483 = vpop.f32.mrb[0].mxu0
      %v484 = vadd.f32 %v228, %v483
      %v485 = vpop.f32.mrb[0].mxu0
      %486 = vmatprep.mubr.bf16.mxu0 0
      %487 = vmatmul.mubr.bf16.gmra.mrb[0].mxu0 %v304
      %v488 = vpop.f32.mrb[0].mxu0
      %v489 = vadd.f32 %v228, %v488
      %v490 = vpop.f32.mrb[0].mxu0
      %v491 = vpop.f32.mrb[0].mxu0
      %v492 = vadd.f32 %v228, %v491
      %v493 = vpop.f32.mrb[0].mxu0
      %494 = vmatprep.mubr.bf16.mxu0 0
      %495 = vmatmul.mubr.bf16.gmra.mrb[0].mxu0 %v305
      %v496 = vpop.f32.mrb[0].mxu0
      %v497 = vadd.f32 %v228, %v496
      %v498 = vpop.f32.mrb[0].mxu0
      %v499 = vpop.f32.mrb[0].mxu0
      %v500 = vadd.f32 %v228, %v499
      %v501 = vpop.f32.mrb[0].mxu0
      %502 = vmatprep.mubr.bf16.mxu0 0
      %503 = vmatmul.mubr.bf16.gmra.mrb[0].mxu0 %v306
      %v504 = vpop.f32.mrb[0].mxu0
      %v505 = vadd.f32 %v228, %v504
      %v506 = vpop.f32.mrb[0].mxu0
      %v507 = vpop.f32.mrb[0].mxu0
      %v508 = vadd.f32 %v228, %v507
      %v509 = vpop.f32.mrb[0].mxu0
      %510 = vmatprep.mubr.bf16.mxu0 0
      %511 = vmatmul.mubr.bf16.gmra.mrb[0].mxu0 %v307
      %v512 = vpop.f32.mrb[0].mxu0
      %v513 = vadd.f32 %v228, %v512
      %v514 = vpop.f32.mrb[0].mxu0
      %v515 = vpop.f32.mrb[0].mxu0
      %v516 = vadd.f32 %v228, %v515
      %v517 = vpop.f32.mrb[0].mxu0
      %518 = vmatprep.mubr.bf16.mxu0 0
      %519 = vmatmul.mubr.bf16.gmra.mrb[0].mxu0 %v308
      %v520 = vpop.f32.mrb[0].mxu0
      %v521 = vadd.f32 %v228, %v520
      %v522 = vpop.f32.mrb[0].mxu0
      %v523 = vpop.f32.mrb[0].mxu0
      %v524 = vadd.f32 %v228, %v523
      %v525 = vpop.f32.mrb[0].mxu0
      %526 = vmatprep.mubr.bf16.mxu0 0
      %527 = vmatmul.mubr.bf16.gmra.mrb[0].mxu0 %v309
      %v528 = vpop.f32.mrb[0].mxu0
      %v529 = vadd.f32 %v228, %v528
      %v530 = vpop.f32.mrb[0].mxu0
      %v531 = vpop.f32.mrb[0].mxu0
      %v532 = vadd.f32 %v228, %v531
      %v533 = vpop.f32.mrb[0].mxu0
      %534 = vdwg.mxu0
      %535 = vst [vmem:[%s172] sm:$0xff] %v409
      %536 = vst [vmem:[%s172 + $0x8] sm:$0xff] %v412
      %537 = vst [vmem:[%s172 + $0x10] sm:$0xff] %v417
      %538 = vst [vmem:[%s172 + $0x18] sm:$0xff] %v420
      %539 = vst [vmem:[%s172 + $0x20] sm:$0xff] %v425
      %540 = vst [vmem:[%s172 + $0x28] sm:$0xff] %v428
      %541 = vst [vmem:[%s172 + $0x30] sm:$0xff] %v433
      %542 = vst [vmem:[%s172 + $0x38] sm:$0xff] %v436
      %543 = vst [vmem:[%s172 + $0x40] sm:$0xff] %v441
      %544 = vst [vmem:[%s172 + $0x48] sm:$0xff] %v444
      %545 = vst [vmem:[%s172 + $0x50] sm:$0xff] %v449
      %546 = vst [vmem:[%s172 + $0x58] sm:$0xff] %v452
      %547 = vst [vmem:[%s172 + $0x60] sm:$0xff] %v457
      %548 = vst [vmem:[%s172 + $0x68] sm:$0xff] %v460
      %549 = vst [vmem:[%s172 + $0x70] sm:$0xff] %v465
      %550 = vst [vmem:[%s172 + $0x78] sm:$0xff] %v468
      %551 = vst [vmem:[%s172 + $0x80] sm:$0xff] %v473
      %552 = vst [vmem:[%s172 + $0x88] sm:$0xff] %v476
      %553 = vst [vmem:[%s172 + $0x90] sm:$0xff] %v481
      %554 = vst [vmem:[%s172 + $0x98] sm:$0xff] %v484
      %555 = vst [vmem:[%s172 + $0xa0] sm:$0xff] %v489
      %556 = vst [vmem:[%s172 + $0xa8] sm:$0xff] %v492
      %557 = vst [vmem:[%s172 + $0xb0] sm:$0xff] %v497
      %558 = vst [vmem:[%s172 + $0xb8] sm:$0xff] %v500
      %559 = vst [vmem:[%s172 + $0xc0] sm:$0xff] %v505
      %560 = vst [vmem:[%s172 + $0xc8] sm:$0xff] %v508
      %561 = vst [vmem:[%s172 + $0xd0] sm:$0xff] %v513
      %562 = vst [vmem:[%s172 + $0xd8] sm:$0xff] %v516
      %563 = vst [vmem:[%s172 + $0xe0] sm:$0xff] %v521
      %564 = vst [vmem:[%s172 + $0xe8] sm:$0xff] %v524
      %565 = vst [vmem:[%s172 + $0xf0] sm:$0xff] %v529
      %566 = vst [vmem:[%s172 + $0xf8] sm:$0xff] %v532
      %s567 = smul.u32 32, %s14
      %p568 = scmp.lt.s32.totalorder %s567, 63
      %s569 = scalar_select %p568, %s567, 63
      %s570 = smul.addr %s569, 8
      %s571 = scalar_lea.vmem %s3, %s570
      // Predicated region
      $region33: #{_conv_forward.1} parent=31 // pred_check
        %p572 = pneg %p100
      $region34: #{_conv_forward.1} parent=31 // pred_check_branch
        %574 = sbr.rel (%p572) target = $region36
      $region35: #{_conv_forward.1} parent=31 // pred_region
        %s575 = smul.u32 32, %s14
      $region36: #{_conv_forward.1} parent=31 // pred_fallthru
        _
    $region32: #{_conv_forward.1} parent=5 // pred_fallthru
      _
    %p576 = scmp.le.s32.totalorder 2, %s9
    // Predicated region
    $region37: #{_conv_forward.1} parent=5 // pred_check
      %p577 = pneg %p576
    $region38: #{_conv_forward.1} parent=5 // pred_check_branch
      %579 = sbr.rel (%p577) target = $region40
    $region39: #{_conv_forward.1} parent=5 // pred_region
      %s580 = ssub.s32 %s9, 2
      // Predicated region
      $region41: #{_conv_forward.1} parent=39 // pred_check
        %p581 = pneg %p106
      $region42: #{_conv_forward.1} parent=39 // pred_check_branch
        %583 = sbr.rel (%p581) target = $region44
      $region43: #{_conv_forward.1} parent=39 // pred_region
        %s584 = smul.u32 32, %s15
        %p585 = scmp.lt.s32.totalorder %s584, 63
        %s586 = scalar_select %p585, %s584, 63
        %s587 = smul.addr %s586, 8
        %s588 = scalar_lea.vmem %s3, %s587
      $region44: #{_conv_forward.1} parent=39 // pred_fallthru
        _
    $region40: #{_conv_forward.1} parent=5 // pred_fallthru
      _
  $region6: #{_conv_forward.1} parent=0 // loop_footer
    %s13 = sadd.s32 1, %s9
  $region7: #{_conv_forward.1} parent=0 // loop_footer_branch
    %8 = sbr.rel target = $region3
  $region8: #{_conv_forward.1} parent=0 // loop_exit
    _

</llo_original>
